<compile_context>
chip_gen: v6e
topology: v6e:2x2x1
jax: 0.10.0
libtpu: 0.0.40
codegen_flags: <defaults>
</compile_context>

<pallas_src>
import jax
import jax.numpy as jnp
from jax.experimental import pallas as pl
from jax.experimental.pallas import tpu as pltpu


_LANE = 128
_SUBLANE_F32 = 8
_MIN_GRID = 8                       # prefer >= 8 grid steps (pipeline + megacore)
_MIN_COPY_BYTES = 1 << 20           # below 1 MiB the copy is pure overhead


def _copy_kernel(x_ref, o_ref):
    # Identity copy of the current tile — the entire "compute" of a view op.
    o_ref[...] = x_ref[...]


_budget_cache = None


def _tpu_budgets():
    """(target_block_bytes, vmem_limit_bytes), derived from the chip's VMEM."""
    global _budget_cache
    if _budget_cache is None:
        vmem_cap = 128 * 1024 * 1024            # v5e / v6e default
        try:
            cap = getattr(pltpu.get_tpu_info(), "vmem_capacity_bytes", None)
            if cap:
                vmem_cap = int(cap)             # 64 MiB on v7x
        except Exception:
            pass
        # 4 live buffers (in + out, double-buffered): keep them <= vmem_cap / 4.
        target_block = max(2 << 20, min(8 << 20, vmem_cap // 16))   # 4 MiB v7x, 8 MiB v5e/v6e
        vmem_limit = max(32 << 20, min(64 << 20, vmem_cap // 2))    # 32 MiB v7x, 64 MiB v5e/v6e
        _budget_cache = (target_block, vmem_limit)
    return _budget_cache


def _best_tile_rows(rows, sublane, limit):
    """Largest multiple-of-`sublane` divisor of `rows` that is <= limit (0 if none)."""
    best = 0
    t = sublane
    while t <= limit:
        if rows % t == 0:
            best = t
        t += sublane
    return best


def _choose_layout(total, itemsize, target_block_bytes):
    """Pick (rows, cols, tile_rows) for a lane-dense 2D copy, or None."""
    if total % _LANE != 0:
        return None
    # Sub-32-bit dtypes pack along sublanes: keep tiles at the native packed tile.
    sublane = _SUBLANE_F32 * max(1, 4 // max(1, itemsize))   # 8 f32, 16 bf16, 32 int8
    best = None
    for cols in (512, 1024, 2048, 4096, 8192, 256, 128):
        if total % cols != 0:
            continue
        rows = total // cols
        limit = min(rows, max(sublane, target_block_bytes // (cols * itemsize)))
        # Prefer a tiling that keeps the grid at least _MIN_GRID deep (pipeline
        # steady state + both v7x TensorCores busy); otherwise take the biggest
        # sublane-aligned tile that fits the byte budget.
        tile_rows = 0
        if rows >= _MIN_GRID * sublane:
            tile_rows = _best_tile_rows(rows, sublane, min(limit, rows // _MIN_GRID))
        if tile_rows == 0:
            tile_rows = _best_tile_rows(rows, sublane, limit)
        if tile_rows == 0:
            continue   # no valid sublane-aligned tiling at this width
        grid_n = rows // tile_rows
        block_bytes = tile_rows * cols * itemsize
        score = (grid_n >= _MIN_GRID, grid_n % 2 == 0, block_bytes)
        if best is None or score > best[0]:
            best = (score, (rows, cols, tile_rows))
    return None if best is None else best[1]


def _pallas_identity_copy(flat2d, tile_rows, vmem_limit_bytes):
    """Tiled, lane-dense identity copy of a (rows, cols) array through VMEM."""
    rows, cols = flat2d.shape
    assert rows % tile_rows == 0
    grid_n = rows // tile_rows
    itemsize = flat2d.dtype.itemsize

    spec = pl.BlockSpec((tile_rows, cols), lambda i: (i, 0))
    return pl.pallas_call(
        _copy_kernel,
        out_shape=jax.ShapeDtypeStruct((rows, cols), flat2d.dtype),
        grid_spec=pltpu.PrefetchScalarGridSpec(
            num_scalar_prefetch=0,
            grid=(grid_n,),
            in_specs=[spec],
            out_specs=spec,
        ),
        # Pure identity over disjoint blocks: alias in/out to halve peak HBM.
        input_output_aliases={0: 0},
        # Zero arithmetic, 2x array-size HBM traffic: help XLA schedule around it.
        cost_estimate=pl.CostEstimate(
            flops=0, transcendentals=0,
            bytes_accessed=2 * rows * cols * itemsize),
        compiler_params=pltpu.CompilerParams(
            # "parallel" so multi-step grids shard across v7x's 2 TensorCores.
            dimension_semantics=("parallel",),
            vmem_limit_bytes=vmem_limit_bytes,
        ),
    )(flat2d)


class View:
    """JAX/Pallas equivalent of the PyTorch View module."""

    def __init__(self, *shape):
        self.shape = tuple(shape)

    def __call__(self, x):
        out_shape = (-1,) + self.shape
        nbytes = x.size * x.dtype.itemsize
        if nbytes < _MIN_COPY_BYTES:
            # view is metadata-only: for small inputs the kernel is pure overhead.
            return jnp.reshape(x, out_shape)
        target_block, vmem_limit = _tpu_budgets()
        layout = _choose_layout(x.size, x.dtype.itemsize, target_block)
        if layout is None:
            # Not cleanly 128/sublane-tileable: metadata-only reshape is exact
            # semantics with zero HBM traffic (and avoids any VMEM OOM path).
            return jnp.reshape(x, out_shape)
        rows, cols, tile_rows = layout
        # Row-major flatten matches PyTorch contiguous .view semantics.
        flat2d = jnp.reshape(x, (rows, cols))
        copied = _pallas_identity_copy(flat2d, tile_rows, vmem_limit)
        # The actual "view": metadata-only reshape to (-1, *self.shape).
        return jnp.reshape(copied, out_shape)


if __name__ == "__main__":
    key = jax.random.PRNGKey(0)

    # Small NCHW input (matches PyTorch conv-style tensors): below the copy
    # cutoff -> metadata-only reshape path.
    x = jax.random.normal(key, (2, 4, 16, 16), dtype=jnp.float32)
    ref = jnp.reshape(x, (-1, 4, 256))
    out = jax.block_until_ready(View(4, 256)(x))
    assert out.shape == (2, 4, 256), out.shape
    assert out.dtype == x.dtype
    assert bool(jnp.all(out == ref))

    # 4 MiB f32 input: exercises the Pallas lane-dense copy path
    # (grid depth >= 8, sublane-aligned tiles, aliased in/out).
    x2 = jax.random.normal(jax.random.fold_in(key, 1), (64, 16, 32, 32),
                           dtype=jnp.float32)
    ref2 = jnp.reshape(x2, (-1, 16, 1024))
    out2 = jax.block_until_ready(View(16, 1024)(x2))
    assert out2.shape == ref2.shape
    assert bool(jnp.all(out2 == ref2))

    # 2 MiB bf16 input: dtype-aware sublane tiling (tile_rows multiple of 16).
    x3 = jax.random.normal(jax.random.fold_in(key, 2), (64, 16, 32, 32),
                           dtype=jnp.bfloat16)
    ref3 = jnp.reshape(x3, (-1, 512))
    out3 = jax.block_until_ready(View(512)(x3))
    assert out3.shape == ref3.shape
    assert bool(jnp.all(out3 == ref3))

    # Non-128-divisible element count: metadata-only reshape fallback.
    # TODO(synk): pad+mask kernel path if a materialized copy is ever required
    # for non-128-divisible element counts (semantically unnecessary for view).
    x4 = jax.random.normal(jax.random.fold_in(key, 3), (3, 5, 7),
                           dtype=jnp.float32)
    out4 = jax.block_until_ready(View(35)(x4))
    assert out4.shape == (3, 35)
    assert bool(jnp.all(out4 == jnp.reshape(x4, (-1, 35))))

    print("KERNEL_OK")
</pallas_src>

<mosaic_0001>
module attributes {stable_mosaic.version = 11 : i64} {
  func.func @_copy_kernel(%arg0: i32, %arg1: memref<256x512xf32, #tpu.memory_space<vmem>>, %arg2: memref<256x512xf32, #tpu.memory_space<vmem>>) attributes {dimension_semantics = [#tpu.dimension_semantics<parallel>], iteration_bounds = array<i64: 8>, scalar_prefetch = 0 : i64, scratch_operands = 0 : i64, tpu.core_type = #tpu.core_type<tc>, window_params = [{transform_indices = @transform_0, window_bounds = array<i64: 256, 512>}, {transform_indices = @transform_1, window_bounds = array<i64: 256, 512>}]} {
    %c0 = arith.constant 0 : index
    %c0_0 = arith.constant 0 : index
    %0 = vector.load %arg1[%c0, %c0_0] : memref<256x512xf32, #tpu.memory_space<vmem>>, vector<256x512xf32>
    %c0_1 = arith.constant 0 : index
    %c0_2 = arith.constant 0 : index
    %1 = vector.load %arg2[%c0_1, %c0_2] : memref<256x512xf32, #tpu.memory_space<vmem>>, vector<256x512xf32>
    tpu.vector_store %arg2[%c0_1, %c0_2], %0 {strides = array<i32>} : memref<256x512xf32, #tpu.memory_space<vmem>>, vector<256x512xf32>,
    return
  }
  func.func @transform_0(%arg0: i32) -> (i32, i32) {
    %c0_i32 = arith.constant 0 : i32
    %c0_i32_0 = arith.constant 0 : i32
    return %arg0, %c0_i32 : i32, i32
  }
  func.func @transform_1(%arg0: i32) -> (i32, i32) {
    %c0_i32 = arith.constant 0 : i32
    %c0_i32_0 = arith.constant 0 : i32
    return %arg0, %c0_i32 : i32, i32
  }
}

</mosaic_0001>

<llo_original>
// kernel: tpu_custom_call.1
$region0: #{tpu_custom_call.1}
  #allocation0 [shape = 'u32[]', space=smem, size = 0x4, offset = 0x4, fixed_abs, tag = 'smem constant byte address 0x4 - core index']
  #allocation1 [shape = 'u32[144,128]{1,0:T(1,128)}', space=vmem, size = 0x12000, scoped, tag = 'internal scratch']
  %s0 = inlined_call_operand.hbm [shape: f32[2048,512], index: 0, kind: input, shape index: {}, may-alias: {0,1}]
  %s1 = inlined_call_operand.hbm [shape: f32[2048,512], index: 1, kind: output, shape index: {}, may-alias: {0,1}]
  %s2 = sld [smem:[#allocation0]]
  $region41: #{tpu_custom_call.1} parent=0
    _
  %s4 = ssub.s32 1, %s2
  %s5 = scalar_select 0, %s4, %s2
  $region1: #{tpu_custom_call.1} parent=0
    #allocation2 [shape = 'u8[1048576]{0}', space=vmem, size = 0x100000, scoped, tag = 'input window, operand 0']
    #allocation3 [shape = 's32[2]{0}', space=sflag, size = 0x8, scoped, tag = 'scoped memory for tpu_custom_call.1']
    #allocation4 [shape = 's32[2]{0}', space=sflag, size = 0x8, scoped, tag = 'scoped memory for tpu_custom_call.1']
    #allocation5 [shape = 'u8[1048576]{0}', space=vmem, size = 0x100000, scoped, tag = 'output window, operand 0']
    %6 = vsyncpa [#allocation3], 0
    %s7 = scalar_lea.sflag [#allocation3], 1
    %8 = vsyncpa %s7, 0
    %9 = vsyncpa [#allocation4], 0
    %s10 = scalar_lea.sflag [#allocation4], 1
    %11 = vsyncpa %s10, 0
    loop: start=0, step=1, limit=10
    $region2: #{tpu_custom_call.1} parent=1 // loop_pre_header
      _
    $region3: #{tpu_custom_call.1} parent=1 // loop_header
      %s13 = sphi 0, %s17
      %p14 = scmp.ge.s32.totalorder %s13, 10
      %s23 = sphi 0, %s25
      %s26 = sphi 0, %s23
      %s27 = sphi 0, %s26
      %s43 = sphi 0, %s27
      %s49 = sphi 0, %s51
      %s52 = sphi 0, %s49
      %s53 = sphi 0, %s52
      %s69 = sphi 0, %s53
    $region4: #{tpu_custom_call.1} parent=1 // loop_header_branch
      %16 = sbr.rel (%p14) target = $region8
    $region5: #{tpu_custom_call.1} parent=1 // loop_body
      %s18 = ssub.s32 %s13, 1
      %s19 = ssub.s32 %s13, 2
      %s20 = sadd.s32 %s13, 1
      %s21 = ssub.s32 %s13, %s20
      %p22 = scmp.eq.s32.totalorder %s21, 0
      %s24 = sadd.s32 %s23, 1
      %s25 = scalar_select %p22, %s23, %s24
      %p28 = pneg %p22
      %p29 = scmp.eq.s32.totalorder %s13, 7
      %p30 = por %p28, %p29
      %p31 = scmp.ne.s32.totalorder %s23, %s26
      %p32 = scmp.eq.s32.totalorder %s13, 0
      %p33 = por %p31, %p32
      %p34 = scmp.ne.s32.totalorder %s23, %s26
      %p35 = scmp.eq.s32.totalorder %s18, 7
      %p36 = por %p34, %p35
      %p37 = scmp.ne.s32.totalorder %s26, %s27
      %p38 = scmp.eq.s32.totalorder %s18, 0
      %p39 = por %p37, %p38
      %p40 = scmp.ne.s32.totalorder %s26, %s27
      %p41 = scmp.eq.s32.totalorder %s19, 7
      %p42 = por %p40, %p41
      %p44 = scmp.ne.s32.totalorder %s27, %s43
      %p45 = scmp.eq.s32.totalorder %s19, 0
      %p46 = por %p44, %p45
      %s47 = ssub.s32 %s13, %s20
      %p48 = scmp.eq.s32.totalorder %s47, 0
      %s50 = sadd.s32 %s49, 1
      %s51 = scalar_select %p48, %s49, %s50
      %p54 = pneg %p48
      %p55 = scmp.eq.s32.totalorder %s13, 7
      %p56 = por %p54, %p55
      %p57 = scmp.ne.s32.totalorder %s49, %s52
      %p58 = scmp.eq.s32.totalorder %s13, 0
      %p59 = por %p57, %p58
      %p60 = scmp.ne.s32.totalorder %s49, %s52
      %p61 = scmp.eq.s32.totalorder %s18, 7
      %p62 = por %p60, %p61
      %p63 = scmp.ne.s32.totalorder %s52, %s53
      %p64 = scmp.eq.s32.totalorder %s18, 0
      %p65 = por %p63, %p64
      %p66 = scmp.ne.s32.totalorder %s52, %s53
      %p67 = scmp.eq.s32.totalorder %s19, 7
      %p68 = por %p66, %p67
      %p70 = scmp.ne.s32.totalorder %s53, %s69
      %p71 = scmp.eq.s32.totalorder %s19, 0
      %p72 = por %p70, %p71
      %p73 = scmp.le.s32.totalorder 1, %s13
      %p74 = scmp.lt.s32.totalorder %s13, 9
      %p75 = pnand %p73, %p74
      %p76 = pneg %p75
      // Predicated region
      $region9: #{tpu_custom_call.1} parent=5 // pred_check
        _
      $region10: #{tpu_custom_call.1} parent=5 // pred_check_branch
        %78 = sbr.rel (%p75) target = $region12
      $region11: #{tpu_custom_call.1} parent=5 // pred_region
        %s79 = ssub.s32 %s13, 1
      $region12: #{tpu_custom_call.1} parent=5 // pred_fallthru
        _
      %p80 = scmp.lt.s32.totalorder %s13, 8
      // Predicated region
      $region13: #{tpu_custom_call.1} parent=5 // pred_check
        %p81 = pneg %p80
      $region14: #{tpu_custom_call.1} parent=5 // pred_check_branch
        %83 = sbr.rel (%p81) target = $region16
      $region15: #{tpu_custom_call.1} parent=5 // pred_region
        // Predicated region
        $region17: #{tpu_custom_call.1} parent=15 // pred_check
          %p84 = pneg %p33
        $region18: #{tpu_custom_call.1} parent=15 // pred_check_branch
          %86 = sbr.rel (%p84) target = $region20
        $region19: #{tpu_custom_call.1} parent=15 // pred_region
          %s87 = sand.u32 %s23, 1
          %s88 = scalar_lea.sflag [#allocation3], %s87
          %s89 = sand.u32 %s23, 1
          %s90 = smul.addr %s89, 1024
          %s91 = scalar_lea.vmem [#allocation2], %s90
          %s92 = smul.u32 32, %s13
          %s94 = ssub.s32 16384, 16384
          %95 = vsyncadd %s88, %s94
          %s96 = smul.addr %s92, 4
          %s97 = smul.addr %s96, 128
          %s98 = scalar_lea.hbm %s0, %s97
          %s99 = sshll.u32 %s91, 4
          %s100 = int_to_ptr.vmem [resolvable:$true] %s99
          %105 = dma.hbm_to_vmem [thread:$0]  %s98, 16384, %s100, %s88, 512, 512, 32
        $region20: #{tpu_custom_call.1} parent=15 // pred_fallthru
          _
      $region16: #{tpu_custom_call.1} parent=5 // pred_fallthru
        _
      %p106 = scmp.le.s32.totalorder 1, %s13
      %p107 = scmp.lt.s32.totalorder %s13, 9
      %p108 = pnand %p106, %p107
      %p109 = pneg %p108
      // Predicated region
      $region21: #{tpu_custom_call.1} parent=5 // pred_check
        _
      $region22: #{tpu_custom_call.1} parent=5 // pred_check_branch
        %111 = sbr.rel (%p108) target = $region24
      $region23: #{tpu_custom_call.1} parent=5 // pred_region
        %s112 = ssub.s32 %s13, 1
        %s113 = sand.u32 %s26, 1
        %s114 = scalar_lea.sflag [#allocation3], %s113
        %s115 = sand.u32 %s26, 1
        %s116 = smul.addr %s115, 1024
        %s117 = scalar_lea.vmem [#allocation2], %s116
        // Predicated region
        $region25: #{tpu_custom_call.1} parent=23 // pred_check
          %p118 = pneg %p39
        $region26: #{tpu_custom_call.1} parent=23 // pred_check_branch
          %120 = sbr.rel (%p118) target = $region28
        $region27: #{tpu_custom_call.1} parent=23 // pred_region
          %121 = dma.done %s114, 16384
        $region28: #{tpu_custom_call.1} parent=23 // pred_fallthru
          _
        %s122 = sand.u32 %s26, 1
        %s123 = scalar_lea.sflag [#allocation3], %s122
        %s124 = sand.u32 %s26, 1
        %s125 = smul.addr %s124, 1024
        %s126 = scalar_lea.vmem [#allocation2], %s125
        %p127 = pneg %p39
        %p128 = pneg %p36
        %p129 = pneg %p65
        %p130 = pneg %p62
        %s131 = sand.u32 %s52, 1
        %s132 = scalar_lea.sflag [#allocation4], %s131
        %s133 = sand.u32 %s52, 1
        %s134 = smul.addr %s133, 1024
        %s135 = scalar_lea.vmem [#allocation5], %s134
        %s136 = smul.u32 32, %s18
        %s137 = smul.u32 32, %s18
        %v138 = vld [vmem:[%s117] sm:$0xff]
        %v139 = vld [vmem:[%s117 + $0x8] sm:$0xff]
        %v140 = vld [vmem:[%s117 + $0x10] sm:$0xff]
        %v141 = vld [vmem:[%s117 + $0x18] sm:$0xff]
        %v142 = vld [vmem:[%s117 + $0x20] sm:$0xff]
        %v143 = vld [vmem:[%s117 + $0x28] sm:$0xff]
        %v144 = vld [vmem:[%s117 + $0x30] sm:$0xff]
        %v145 = vld [vmem:[%s117 + $0x38] sm:$0xff]
        %v146 = vld [vmem:[%s117 + $0x40] sm:$0xff]
        %v147 = vld [vmem:[%s117 + $0x48] sm:$0xff]
        %v148 = vld [vmem:[%s117 + $0x50] sm:$0xff]
        %v149 = vld [vmem:[%s117 + $0x58] sm:$0xff]
        %v150 = vld [vmem:[%s117 + $0x60] sm:$0xff]
        %v151 = vld [vmem:[%s117 + $0x68] sm:$0xff]
        %v152 = vld [vmem:[%s117 + $0x70] sm:$0xff]
        %v153 = vld [vmem:[%s117 + $0x78] sm:$0xff]
        %v154 = vld [vmem:[%s117 + $0x80] sm:$0xff]
        %v155 = vld [vmem:[%s117 + $0x88] sm:$0xff]
        %v156 = vld [vmem:[%s117 + $0x90] sm:$0xff]
        %v157 = vld [vmem:[%s117 + $0x98] sm:$0xff]
        %v158 = vld [vmem:[%s117 + $0xa0] sm:$0xff]
        %v159 = vld [vmem:[%s117 + $0xa8] sm:$0xff]
        %v160 = vld [vmem:[%s117 + $0xb0] sm:$0xff]
        %v161 = vld [vmem:[%s117 + $0xb8] sm:$0xff]
        %v162 = vld [vmem:[%s117 + $0xc0] sm:$0xff]
        %v163 = vld [vmem:[%s117 + $0xc8] sm:$0xff]
        %v164 = vld [vmem:[%s117 + $0xd0] sm:$0xff]
        %v165 = vld [vmem:[%s117 + $0xd8] sm:$0xff]
        %v166 = vld [vmem:[%s117 + $0xe0] sm:$0xff]
        %v167 = vld [vmem:[%s117 + $0xe8] sm:$0xff]
        %v168 = vld [vmem:[%s117 + $0xf0] sm:$0xff]
        %v169 = vld [vmem:[%s117 + $0xf8] sm:$0xff]
        %v170 = vld [vmem:[%s117 + $0x100] sm:$0xff]
        %v171 = vld [vmem:[%s117 + $0x108] sm:$0xff]
        %v172 = vld [vmem:[%s117 + $0x110] sm:$0xff]
        %v173 = vld [vmem:[%s117 + $0x118] sm:$0xff]
        %v174 = vld [vmem:[%s117 + $0x120] sm:$0xff]
        %v175 = vld [vmem:[%s117 + $0x128] sm:$0xff]
        %v176 = vld [vmem:[%s117 + $0x130] sm:$0xff]
        %v177 = vld [vmem:[%s117 + $0x138] sm:$0xff]
        %v178 = vld [vmem:[%s117 + $0x140] sm:$0xff]
        %v179 = vld [vmem:[%s117 + $0x148] sm:$0xff]
        %v180 = vld [vmem:[%s117 + $0x150] sm:$0xff]
        %v181 = vld [vmem:[%s117 + $0x158] sm:$0xff]
        %v182 = vld [vmem:[%s117 + $0x160] sm:$0xff]
        %v183 = vld [vmem:[%s117 + $0x168] sm:$0xff]
        %v184 = vld [vmem:[%s117 + $0x170] sm:$0xff]
        %v185 = vld [vmem:[%s117 + $0x178] sm:$0xff]
        %v186 = vld [vmem:[%s117 + $0x180] sm:$0xff]
        %v187 = vld [vmem:[%s117 + $0x188] sm:$0xff]
        %v188 = vld [vmem:[%s117 + $0x190] sm:$0xff]
        %v189 = vld [vmem:[%s117 + $0x198] sm:$0xff]
        %v190 = vld [vmem:[%s117 + $0x1a0] sm:$0xff]
        %v191 = vld [vmem:[%s117 + $0x1a8] sm:$0xff]
        %v192 = vld [vmem:[%s117 + $0x1b0] sm:$0xff]
        %v193 = vld [vmem:[%s117 + $0x1b8] sm:$0xff]
        %v194 = vld [vmem:[%s117 + $0x1c0] sm:$0xff]
        %v195 = vld [vmem:[%s117 + $0x1c8] sm:$0xff]
        %v196 = vld [vmem:[%s117 + $0x1d0] sm:$0xff]
        %v197 = vld [vmem:[%s117 + $0x1d8] sm:$0xff]
        %v198 = vld [vmem:[%s117 + $0x1e0] sm:$0xff]
        %v199 = vld [vmem:[%s117 + $0x1e8] sm:$0xff]
        %v200 = vld [vmem:[%s117 + $0x1f0] sm:$0xff]
        %v201 = vld [vmem:[%s117 + $0x1f8] sm:$0xff]
        %v202 = vld [vmem:[%s117 + $0x200] sm:$0xff]
        %v203 = vld [vmem:[%s117 + $0x208] sm:$0xff]
        %v204 = vld [vmem:[%s117 + $0x210] sm:$0xff]
        %v205 = vld [vmem:[%s117 + $0x218] sm:$0xff]
        %v206 = vld [vmem:[%s117 + $0x220] sm:$0xff]
        %v207 = vld [vmem:[%s117 + $0x228] sm:$0xff]
        %v208 = vld [vmem:[%s117 + $0x230] sm:$0xff]
        %v209 = vld [vmem:[%s117 + $0x238] sm:$0xff]
        %v210 = vld [vmem:[%s117 + $0x240] sm:$0xff]
        %v211 = vld [vmem:[%s117 + $0x248] sm:$0xff]
        %v212 = vld [vmem:[%s117 + $0x250] sm:$0xff]
        %v213 = vld [vmem:[%s117 + $0x258] sm:$0xff]
        %v214 = vld [vmem:[%s117 + $0x260] sm:$0xff]
        %v215 = vld [vmem:[%s117 + $0x268] sm:$0xff]
        %v216 = vld [vmem:[%s117 + $0x270] sm:$0xff]
        %v217 = vld [vmem:[%s117 + $0x278] sm:$0xff]
        %v218 = vld [vmem:[%s117 + $0x280] sm:$0xff]
        %v219 = vld [vmem:[%s117 + $0x288] sm:$0xff]
        %v220 = vld [vmem:[%s117 + $0x290] sm:$0xff]
        %v221 = vld [vmem:[%s117 + $0x298] sm:$0xff]
        %v222 = vld [vmem:[%s117 + $0x2a0] sm:$0xff]
        %v223 = vld [vmem:[%s117 + $0x2a8] sm:$0xff]
        %v224 = vld [vmem:[%s117 + $0x2b0] sm:$0xff]
        %v225 = vld [vmem:[%s117 + $0x2b8] sm:$0xff]
        %v226 = vld [vmem:[%s117 + $0x2c0] sm:$0xff]
        %v227 = vld [vmem:[%s117 + $0x2c8] sm:$0xff]
        %v228 = vld [vmem:[%s117 + $0x2d0] sm:$0xff]
        %v229 = vld [vmem:[%s117 + $0x2d8] sm:$0xff]
        %v230 = vld [vmem:[%s117 + $0x2e0] sm:$0xff]
        %v231 = vld [vmem:[%s117 + $0x2e8] sm:$0xff]
        %v232 = vld [vmem:[%s117 + $0x2f0] sm:$0xff]
        %v233 = vld [vmem:[%s117 + $0x2f8] sm:$0xff]
        %v234 = vld [vmem:[%s117 + $0x300] sm:$0xff]
        %v235 = vld [vmem:[%s117 + $0x308] sm:$0xff]
        %v236 = vld [vmem:[%s117 + $0x310] sm:$0xff]
        %v237 = vld [vmem:[%s117 + $0x318] sm:$0xff]
        %v238 = vld [vmem:[%s117 + $0x320] sm:$0xff]
        %v239 = vld [vmem:[%s117 + $0x328] sm:$0xff]
        %v240 = vld [vmem:[%s117 + $0x330] sm:$0xff]
        %v241 = vld [vmem:[%s117 + $0x338] sm:$0xff]
        %v242 = vld [vmem:[%s117 + $0x340] sm:$0xff]
        %v243 = vld [vmem:[%s117 + $0x348] sm:$0xff]
        %v244 = vld [vmem:[%s117 + $0x350] sm:$0xff]
        %v245 = vld [vmem:[%s117 + $0x358] sm:$0xff]
        %v246 = vld [vmem:[%s117 + $0x360] sm:$0xff]
        %v247 = vld [vmem:[%s117 + $0x368] sm:$0xff]
        %v248 = vld [vmem:[%s117 + $0x370] sm:$0xff]
        %v249 = vld [vmem:[%s117 + $0x378] sm:$0xff]
        %v250 = vld [vmem:[%s117 + $0x380] sm:$0xff]
        %v251 = vld [vmem:[%s117 + $0x388] sm:$0xff]
        %v252 = vld [vmem:[%s117 + $0x390] sm:$0xff]
        %v253 = vld [vmem:[%s117 + $0x398] sm:$0xff]
        %v254 = vld [vmem:[%s117 + $0x3a0] sm:$0xff]
        %v255 = vld [vmem:[%s117 + $0x3a8] sm:$0xff]
        %v256 = vld [vmem:[%s117 + $0x3b0] sm:$0xff]
        %v257 = vld [vmem:[%s117 + $0x3b8] sm:$0xff]
        %v258 = vld [vmem:[%s117 + $0x3c0] sm:$0xff]
        %v259 = vld [vmem:[%s117 + $0x3c8] sm:$0xff]
        %v260 = vld [vmem:[%s117 + $0x3d0] sm:$0xff]
        %v261 = vld [vmem:[%s117 + $0x3d8] sm:$0xff]
        %v262 = vld [vmem:[%s117 + $0x3e0] sm:$0xff]
        %v263 = vld [vmem:[%s117 + $0x3e8] sm:$0xff]
        %v264 = vld [vmem:[%s117 + $0x3f0] sm:$0xff]
        %v265 = vld [vmem:[%s117 + $0x3f8] sm:$0xff]
        %266 = vst [vmem:[%s135] sm:$0xff] %v138
        %267 = vst [vmem:[%s135 + $0x8] sm:$0xff] %v139
        %268 = vst [vmem:[%s135 + $0x10] sm:$0xff] %v140
        %269 = vst [vmem:[%s135 + $0x18] sm:$0xff] %v141
        %270 = vst [vmem:[%s135 + $0x20] sm:$0xff] %v142
        %271 = vst [vmem:[%s135 + $0x28] sm:$0xff] %v143
        %272 = vst [vmem:[%s135 + $0x30] sm:$0xff] %v144
        %273 = vst [vmem:[%s135 + $0x38] sm:$0xff] %v145
        %274 = vst [vmem:[%s135 + $0x40] sm:$0xff] %v146
        %275 = vst [vmem:[%s135 + $0x48] sm:$0xff] %v147
        %276 = vst [vmem:[%s135 + $0x50] sm:$0xff] %v148
        %277 = vst [vmem:[%s135 + $0x58] sm:$0xff] %v149
        %278 = vst [vmem:[%s135 + $0x60] sm:$0xff] %v150
        %279 = vst [vmem:[%s135 + $0x68] sm:$0xff] %v151
        %280 = vst [vmem:[%s135 + $0x70] sm:$0xff] %v152
        %281 = vst [vmem:[%s135 + $0x78] sm:$0xff] %v153
        %282 = vst [vmem:[%s135 + $0x80] sm:$0xff] %v154
        %283 = vst [vmem:[%s135 + $0x88] sm:$0xff] %v155
        %284 = vst [vmem:[%s135 + $0x90] sm:$0xff] %v156
        %285 = vst [vmem:[%s135 + $0x98] sm:$0xff] %v157
        %286 = vst [vmem:[%s135 + $0xa0] sm:$0xff] %v158
        %287 = vst [vmem:[%s135 + $0xa8] sm:$0xff] %v159
        %288 = vst [vmem:[%s135 + $0xb0] sm:$0xff] %v160
        %289 = vst [vmem:[%s135 + $0xb8] sm:$0xff] %v161
        %290 = vst [vmem:[%s135 + $0xc0] sm:$0xff] %v162
        %291 = vst [vmem:[%s135 + $0xc8] sm:$0xff] %v163
        %292 = vst [vmem:[%s135 + $0xd0] sm:$0xff] %v164
        %293 = vst [vmem:[%s135 + $0xd8] sm:$0xff] %v165
        %294 = vst [vmem:[%s135 + $0xe0] sm:$0xff] %v166
        %295 = vst [vmem:[%s135 + $0xe8] sm:$0xff] %v167
        %296 = vst [vmem:[%s135 + $0xf0] sm:$0xff] %v168
        %297 = vst [vmem:[%s135 + $0xf8] sm:$0xff] %v169
        %298 = vst [vmem:[%s135 + $0x100] sm:$0xff] %v170
        %299 = vst [vmem:[%s135 + $0x108] sm:$0xff] %v171
        %300 = vst [vmem:[%s135 + $0x110] sm:$0xff] %v172
        %301 = vst [vmem:[%s135 + $0x118] sm:$0xff] %v173
        %302 = vst [vmem:[%s135 + $0x120] sm:$0xff] %v174
        %303 = vst [vmem:[%s135 + $0x128] sm:$0xff] %v175
        %304 = vst [vmem:[%s135 + $0x130] sm:$0xff] %v176
        %305 = vst [vmem:[%s135 + $0x138] sm:$0xff] %v177
        %306 = vst [vmem:[%s135 + $0x140] sm:$0xff] %v178
        %307 = vst [vmem:[%s135 + $0x148] sm:$0xff] %v179
        %308 = vst [vmem:[%s135 + $0x150] sm:$0xff] %v180
        %309 = vst [vmem:[%s135 + $0x158] sm:$0xff] %v181
        %310 = vst [vmem:[%s135 + $0x160] sm:$0xff] %v182
        %311 = vst [vmem:[%s135 + $0x168] sm:$0xff] %v183
        %312 = vst [vmem:[%s135 + $0x170] sm:$0xff] %v184
        %313 = vst [vmem:[%s135 + $0x178] sm:$0xff] %v185
        %314 = vst [vmem:[%s135 + $0x180] sm:$0xff] %v186
        %315 = vst [vmem:[%s135 + $0x188] sm:$0xff] %v187
        %316 = vst [vmem:[%s135 + $0x190] sm:$0xff] %v188
        %317 = vst [vmem:[%s135 + $0x198] sm:$0xff] %v189
        %318 = vst [vmem:[%s135 + $0x1a0] sm:$0xff] %v190
        %319 = vst [vmem:[%s135 + $0x1a8] sm:$0xff] %v191
        %320 = vst [vmem:[%s135 + $0x1b0] sm:$0xff] %v192
        %321 = vst [vmem:[%s135 + $0x1b8] sm:$0xff] %v193
        %322 = vst [vmem:[%s135 + $0x1c0] sm:$0xff] %v194
        %323 = vst [vmem:[%s135 + $0x1c8] sm:$0xff] %v195
        %324 = vst [vmem:[%s135 + $0x1d0] sm:$0xff] %v196
        %325 = vst [vmem:[%s135 + $0x1d8] sm:$0xff] %v197
        %326 = vst [vmem:[%s135 + $0x1e0] sm:$0xff] %v198
        %327 = vst [vmem:[%s135 + $0x1e8] sm:$0xff] %v199
        %328 = vst [vmem:[%s135 + $0x1f0] sm:$0xff] %v200
        %329 = vst [vmem:[%s135 + $0x1f8] sm:$0xff] %v201
        %330 = vst [vmem:[%s135 + $0x200] sm:$0xff] %v202
        %331 = vst [vmem:[%s135 + $0x208] sm:$0xff] %v203
        %332 = vst [vmem:[%s135 + $0x210] sm:$0xff] %v204
        %333 = vst [vmem:[%s135 + $0x218] sm:$0xff] %v205
        %334 = vst [vmem:[%s135 + $0x220] sm:$0xff] %v206
        %335 = vst [vmem:[%s135 + $0x228] sm:$0xff] %v207
        %336 = vst [vmem:[%s135 + $0x230] sm:$0xff] %v208
        %337 = vst [vmem:[%s135 + $0x238] sm:$0xff] %v209
        %338 = vst [vmem:[%s135 + $0x240] sm:$0xff] %v210
        %339 = vst [vmem:[%s135 + $0x248] sm:$0xff] %v211
        %340 = vst [vmem:[%s135 + $0x250] sm:$0xff] %v212
        %341 = vst [vmem:[%s135 + $0x258] sm:$0xff] %v213
        %342 = vst [vmem:[%s135 + $0x260] sm:$0xff] %v214
        %343 = vst [vmem:[%s135 + $0x268] sm:$0xff] %v215
        %344 = vst [vmem:[%s135 + $0x270] sm:$0xff] %v216
        %345 = vst [vmem:[%s135 + $0x278] sm:$0xff] %v217
        %346 = vst [vmem:[%s135 + $0x280] sm:$0xff] %v218
        %347 = vst [vmem:[%s135 + $0x288] sm:$0xff] %v219
        %348 = vst [vmem:[%s135 + $0x290] sm:$0xff] %v220
        %349 = vst [vmem:[%s135 + $0x298] sm:$0xff] %v221
        %350 = vst [vmem:[%s135 + $0x2a0] sm:$0xff] %v222
        %351 = vst [vmem:[%s135 + $0x2a8] sm:$0xff] %v223
        %352 = vst [vmem:[%s135 + $0x2b0] sm:$0xff] %v224
        %353 = vst [vmem:[%s135 + $0x2b8] sm:$0xff] %v225
        %354 = vst [vmem:[%s135 + $0x2c0] sm:$0xff] %v226
        %355 = vst [vmem:[%s135 + $0x2c8] sm:$0xff] %v227
        %356 = vst [vmem:[%s135 + $0x2d0] sm:$0xff] %v228
        %357 = vst [vmem:[%s135 + $0x2d8] sm:$0xff] %v229
        %358 = vst [vmem:[%s135 + $0x2e0] sm:$0xff] %v230
        %359 = vst [vmem:[%s135 + $0x2e8] sm:$0xff] %v231
        %360 = vst [vmem:[%s135 + $0x2f0] sm:$0xff] %v232
        %361 = vst [vmem:[%s135 + $0x2f8] sm:$0xff] %v233
        %362 = vst [vmem:[%s135 + $0x300] sm:$0xff] %v234
        %363 = vst [vmem:[%s135 + $0x308] sm:$0xff] %v235
        %364 = vst [vmem:[%s135 + $0x310] sm:$0xff] %v236
        %365 = vst [vmem:[%s135 + $0x318] sm:$0xff] %v237
        %366 = vst [vmem:[%s135 + $0x320] sm:$0xff] %v238
        %367 = vst [vmem:[%s135 + $0x328] sm:$0xff] %v239
        %368 = vst [vmem:[%s135 + $0x330] sm:$0xff] %v240
        %369 = vst [vmem:[%s135 + $0x338] sm:$0xff] %v241
        %370 = vst [vmem:[%s135 + $0x340] sm:$0xff] %v242
        %371 = vst [vmem:[%s135 + $0x348] sm:$0xff] %v243
        %372 = vst [vmem:[%s135 + $0x350] sm:$0xff] %v244
        %373 = vst [vmem:[%s135 + $0x358] sm:$0xff] %v245
        %374 = vst [vmem:[%s135 + $0x360] sm:$0xff] %v246
        %375 = vst [vmem:[%s135 + $0x368] sm:$0xff] %v247
        %376 = vst [vmem:[%s135 + $0x370] sm:$0xff] %v248
        %377 = vst [vmem:[%s135 + $0x378] sm:$0xff] %v249
        %378 = vst [vmem:[%s135 + $0x380] sm:$0xff] %v250
        %379 = vst [vmem:[%s135 + $0x388] sm:$0xff] %v251
        %380 = vst [vmem:[%s135 + $0x390] sm:$0xff] %v252
        %381 = vst [vmem:[%s135 + $0x398] sm:$0xff] %v253
        %382 = vst [vmem:[%s135 + $0x3a0] sm:$0xff] %v254
        %383 = vst [vmem:[%s135 + $0x3a8] sm:$0xff] %v255
        %384 = vst [vmem:[%s135 + $0x3b0] sm:$0xff] %v256
        %385 = vst [vmem:[%s135 + $0x3b8] sm:$0xff] %v257
        %386 = vst [vmem:[%s135 + $0x3c0] sm:$0xff] %v258
        %387 = vst [vmem:[%s135 + $0x3c8] sm:$0xff] %v259
        %388 = vst [vmem:[%s135 + $0x3d0] sm:$0xff] %v260
        %389 = vst [vmem:[%s135 + $0x3d8] sm:$0xff] %v261
        %390 = vst [vmem:[%s135 + $0x3e0] sm:$0xff] %v262
        %391 = vst [vmem:[%s135 + $0x3e8] sm:$0xff] %v263
        %392 = vst [vmem:[%s135 + $0x3f0] sm:$0xff] %v264
        %393 = vst [vmem:[%s135 + $0x3f8] sm:$0xff] %v265
        %s394 = sand.u32 %s52, 1
        %s395 = scalar_lea.sflag [#allocation4], %s394
        %s396 = sand.u32 %s52, 1
        %s397 = smul.addr %s396, 1024
        %s398 = scalar_lea.vmem [#allocation5], %s397
        // Predicated region
        $region29: #{tpu_custom_call.1} parent=23 // pred_check
          %p399 = pneg %p62
        $region30: #{tpu_custom_call.1} parent=23 // pred_check_branch
          %401 = sbr.rel (%p399) target = $region32
        $region31: #{tpu_custom_call.1} parent=23 // pred_region
          %s402 = smul.u32 32, %s18
          %s404 = ssub.s32 16384, 16384
          %405 = vsyncadd %s395, %s404
          %s406 = smul.addr %s402, 4
          %s407 = smul.addr %s406, 128
          %s408 = scalar_lea.hbm %s1, %s407
          %s409 = sshll.u32 %s398, 4
          %s410 = int_to_ptr.vmem [resolvable:$true] %s409
          %415 = dma.vmem_to_hbm [thread:$0]  %s410, 16384, %s408, %s395, 512, 512, 32
        $region32: #{tpu_custom_call.1} parent=23 // pred_fallthru
          _
      $region24: #{tpu_custom_call.1} parent=5 // pred_fallthru
        _
      %p416 = scmp.le.s32.totalorder 2, %s13
      // Predicated region
      $region33: #{tpu_custom_call.1} parent=5 // pred_check
        %p417 = pneg %p416
      $region34: #{tpu_custom_call.1} parent=5 // pred_check_branch
        %419 = sbr.rel (%p417) target = $region36
      $region35: #{tpu_custom_call.1} parent=5 // pred_region
        %s420 = ssub.s32 %s13, 2
        // Predicated region
        $region37: #{tpu_custom_call.1} parent=35 // pred_check
          %p421 = pneg %p68
        $region38: #{tpu_custom_call.1} parent=35 // pred_check_branch
          %423 = sbr.rel (%p421) target = $region40
        $region39: #{tpu_custom_call.1} parent=35 // pred_region
          %s424 = sand.u32 %s53, 1
          %s425 = scalar_lea.sflag [#allocation4], %s424
          %s426 = sand.u32 %s53, 1
          %s427 = smul.addr %s426, 1024
          %s428 = scalar_lea.vmem [#allocation5], %s427
          %429 = dma.done %s425, 16384
        $region40: #{tpu_custom_call.1} parent=35 // pred_fallthru
          _
      $region36: #{tpu_custom_call.1} parent=5 // pred_fallthru
        _
    $region6: #{tpu_custom_call.1} parent=1 // loop_footer
      %s17 = sadd.s32 1, %s13
    $region7: #{tpu_custom_call.1} parent=1 // loop_footer_branch
      %12 = sbr.rel target = $region3
    $region8: #{tpu_custom_call.1} parent=1 // loop_exit
      _
    %430 = vsyncpa [#allocation3], 1
    %s431 = scalar_lea.sflag [#allocation3], 1
    %432 = vsyncpa %s431, 1
    %433 = vsyncpa [#allocation4], 1
    %s434 = scalar_lea.sflag [#allocation4], 1
    %435 = vsyncpa %s434, 1

</llo_original>
